<compile_context>
chip_gen: v7x
topology: tpu7x:2x2x1
jax: 0.10.0
libtpu: 0.0.40
codegen_flags: <defaults>
</compile_context>

<pallas_src>
import math

import jax
import jax.numpy as jnp
from jax.experimental import pallas as pl
from jax.experimental.pallas import tpu as pltpu

_LANES = 128
_COMPS = 3
_INTER = _COMPS * _LANES  # 384: one row = 128 pixels x 3 interleaved components


def _selection_matrix():
    """(384, 128) 0/1 matrix S[c, j] = 1 iff c // 3 == j.

    p @ S sums each pixel's three interleaved component-products into its lane.
    Exactly representable in bf16, so it never limits precision.
    """
    c = jnp.arange(_INTER)[:, None]
    j = jnp.arange(_LANES)[None, :]
    return (c // _COMPS == j).astype(jnp.bfloat16)


def _vignette_kernel(sel_ref, ray_ref, zaxis_ref, out_ref):
    # Native interleaved layout: column 3*j + k of a row holds component k of
    # lane-pixel j.  Upcast in-kernel (free unpack on load; required on v5e).
    p = ray_ref[...].astype(jnp.float32) * zaxis_ref[...].astype(jnp.float32)
    sel = sel_ref[...]                                   # (384, 128) bf16 0/1

    # Exact (to ~f32) 3-lane compaction on the idle MXU: split the f32
    # products into three bf16 pieces, accumulate each pass in f32.
    p0 = p.astype(jnp.bfloat16)
    r1 = p - p0.astype(jnp.float32)
    p1 = r1.astype(jnp.bfloat16)
    p2 = (r1 - p1.astype(jnp.float32)).astype(jnp.bfloat16)
    d = (jnp.dot(p0, sel, preferred_element_type=jnp.float32)
         + jnp.dot(p1, sel, preferred_element_type=jnp.float32)
         + jnp.dot(p2, sel, preferred_element_type=jnp.float32))  # (tr, 128)

    out_ref[...] = (d * d * d).astype(out_ref.dtype)     # lane-dense store


def _pick_tile_rows(rows, tile_pixels):
    """Rows (of 128 pixels each) per grid step.

    The op is pure HBM streaming, so pick the largest tile that fits VMEM to
    amortize per-step overhead.  No minimum-step heuristic (v5e/v6e are single
    TensorCore); only keep the step count even when splitting at all so v7x's
    two TensorCores get balanced work on the 'parallel' axis.
    """
    if rows <= 8:
        return rows
    target = max(8, (tile_pixels // _LANES) // 8 * 8)
    tr = min(rows, target)
    steps = -(-rows // tr)
    if steps > 1 and steps % 2 == 1:        # v7x megacore: prefer even split
        steps += 1
        tr = -(-rows // steps)
        tr = max(8, -(-tr // 8) * 8)
    return tr


def vignette_shader(ray_directions, pixel_frames, *, tile_pixels=262144):
    batch_shape = jnp.broadcast_shapes(ray_directions.shape[:-1],
                                       pixel_frames.shape[:-2])
    out_dtype = jnp.result_type(ray_directions.dtype, pixel_frames.dtype)
    if out_dtype == jnp.float64:
        # TODO(synk): TPU has no f64 compute path; compute and return f32.
        out_dtype = jnp.dtype(jnp.float32)
    n_pix = math.prod(batch_shape)

    def native(x):
        return x.astype(jnp.float32) if x.dtype == jnp.float64 else x

    # Keep native dtype (bf16 stays bf16 -> half the input HBM traffic).
    rays = native(jnp.broadcast_to(ray_directions, batch_shape + (3,)))
    rays = rays.reshape(n_pix, 3)
    # Frame z-axis column: the full 36 B/px frame is read from HBM by this one
    # fused slice; only 12 B/px is written back and later re-read by the kernel.
    zaxis = native(jnp.broadcast_to(pixel_frames[..., 2], batch_shape + (3,)))
    zaxis = zaxis.reshape(n_pix, 3)

    rows = -(-n_pix // _LANES)                 # ceil(n_pix / 128)
    n_eff = rows * _LANES
    if n_eff != n_pix:
        # Needed only to make the free (rows, 384) reshape legal; zero pad is
        # safe (0 * 0 summed then cubed = 0).
        rays = jnp.pad(rays, ((0, n_eff - n_pix), (0, 0)))
        zaxis = jnp.pad(zaxis, ((0, n_eff - n_pix), (0, 0)))

    rays2 = rays.reshape(rows, _INTER)         # free: row-major preserved
    zaxis2 = zaxis.reshape(rows, _INTER)       # free

    tr = _pick_tile_rows(rows, tile_pixels)
    grid = (pl.cdiv(rows, tr),)
    sel = _selection_matrix()

    out = pl.pallas_call(
        _vignette_kernel,
        out_shape=jax.ShapeDtypeStruct((rows, _LANES), out_dtype),
        grid_spec=pltpu.PrefetchScalarGridSpec(
            num_scalar_prefetch=0,
            grid=grid,
            in_specs=[
                # Constant selection matrix: block index never changes, so the
                # pipeline fetches it once (96 KiB total).
                pl.BlockSpec((_INTER, _LANES), lambda i: (0, 0)),
                pl.BlockSpec((tr, _INTER), lambda i: (i, 0)),
                pl.BlockSpec((tr, _INTER), lambda i: (i, 0)),
            ],
            out_specs=pl.BlockSpec((tr, _LANES), lambda i: (i, 0)),
        ),
        compiler_params=pltpu.CompilerParams(
            dimension_semantics=("parallel",),
            # tr=2048 f32: ~14 MiB of double-buffered pipeline blocks plus the
            # in-kernel split temporaries; 48 MiB leaves headroom and is still
            # under v7x's 64 MiB physical VMEM (v5e/v6e have 128 MiB).
            vmem_limit_bytes=48 * 1024 * 1024,
        ),
    )(sel, rays2, zaxis2)

    out = out.reshape(n_eff)[:n_pix]           # free when n_pix % 128 == 0
    return out.reshape(batch_shape + (1,))


if __name__ == "__main__":
    key = jax.random.PRNGKey(0)
    k1, k2 = jax.random.split(key)

    B, H, W = 2, 16, 16
    rays = jax.random.normal(k1, (B, H, W, 3), jnp.float32)
    rays = rays / jnp.linalg.norm(rays, axis=-1, keepdims=True)

    # Deterministic pixel frames with unit-norm columns; only column 2 is used.
    frames = jax.random.normal(k2, (B, H, W, 3, 3), jnp.float32)
    frames = frames / jnp.linalg.norm(frames, axis=-2, keepdims=True)

    out = vignette_shader(rays, frames)
    out = jax.block_until_ready(out)

    # Pure-JAX reference (matches the PyTorch forward exactly).
    ref = jnp.sum(rays * frames[..., 2], axis=-1, keepdims=True) ** 3

    assert out.shape == (B, H, W, 1), out.shape
    assert out.dtype == jnp.float32, out.dtype
    assert bool(jnp.all(jnp.isfinite(out)))
    assert bool(jnp.allclose(out, ref, atol=1e-5, rtol=1e-5)), (
        float(jnp.max(jnp.abs(out - ref))))
    print("KERNEL_OK")
</pallas_src>

<mosaic_0001>
module attributes {stable_mosaic.version = 11 : i64} {
  func.func @_vignette_kernel(%arg0: i32, %arg1: memref<384x128xbf16, #tpu.memory_space<vmem>>, %arg2: memref<4x384xf32, #tpu.memory_space<vmem>>, %arg3: memref<4x384xf32, #tpu.memory_space<vmem>>, %arg4: memref<4x128xf32, #tpu.memory_space<vmem>>) attributes {dimension_semantics = [#tpu.dimension_semantics<parallel>], iteration_bounds = array<i64: 1>, scalar_prefetch = 0 : i64, scratch_operands = 0 : i64, tpu.core_type = #tpu.core_type<tc>, window_params = [{pipeline_mode = #tpu.pipeline_mode<synchronous>, transform_indices = @transform_0, window_bounds = array<i64: 384, 128>}, {transform_indices = @transform_1, window_bounds = array<i64: 4, 384>}, {transform_indices = @transform_2, window_bounds = array<i64: 4, 384>}, {transform_indices = @transform_3, window_bounds = array<i64: 4, 128>}]} {
    %c0 = arith.constant 0 : index
    %c0_0 = arith.constant 0 : index
    %0 = vector.load %arg2[%c0, %c0_0] : memref<4x384xf32, #tpu.memory_space<vmem>>, vector<4x384xf32>
    %c0_1 = arith.constant 0 : index
    %c0_2 = arith.constant 0 : index
    %1 = vector.load %arg3[%c0_1, %c0_2] : memref<4x384xf32, #tpu.memory_space<vmem>>, vector<4x384xf32>
    %2 = arith.mulf %0, %1 : vector<4x384xf32>
    %c0_3 = arith.constant 0 : index
    %c0_4 = arith.constant 0 : index
    %3 = vector.load %arg1[%c0_3, %c0_4] : memref<384x128xbf16, #tpu.memory_space<vmem>>, vector<384x128xbf16>
    %4 = arith.truncf %2 : vector<4x384xf32> to vector<4x384xbf16>
    %5 = arith.extf %4 : vector<4x384xbf16> to vector<4x384xf32>
    %6 = arith.subf %2, %5 : vector<4x384xf32>
    %7 = arith.truncf %6 : vector<4x384xf32> to vector<4x384xbf16>
    %8 = arith.extf %7 : vector<4x384xbf16> to vector<4x384xf32>
    %9 = arith.subf %6, %8 : vector<4x384xf32>
    %10 = arith.truncf %9 : vector<4x384xf32> to vector<4x384xbf16>
    %cst = arith.constant dense<0.000000e+00> : vector<4x128xf32>
    %11 = tpu.matmul %4, %3, %cst {dimension_numbers = #tpu.dot_dimension_numbers<[1], [0], [0], [1], [0, 0, 1, 1], [], []>} : vector<4x384xbf16>, vector<384x128xbf16>, vector<4x128xf32> -> vector<4x128xf32>
    %cst_5 = arith.constant dense<0.000000e+00> : vector<4x128xf32>
    %12 = tpu.matmul %7, %3, %cst_5 {dimension_numbers = #tpu.dot_dimension_numbers<[1], [0], [0], [1], [0, 0, 1, 1], [], []>} : vector<4x384xbf16>, vector<384x128xbf16>, vector<4x128xf32> -> vector<4x128xf32>
    %13 = arith.addf %11, %12 : vector<4x128xf32>
    %cst_6 = arith.constant dense<0.000000e+00> : vector<4x128xf32>
    %14 = tpu.matmul %10, %3, %cst_6 {dimension_numbers = #tpu.dot_dimension_numbers<[1], [0], [0], [1], [0, 0, 1, 1], [], []>} : vector<4x384xbf16>, vector<384x128xbf16>, vector<4x128xf32> -> vector<4x128xf32>
    %15 = arith.addf %13, %14 : vector<4x128xf32>
    %16 = arith.mulf %15, %15 : vector<4x128xf32>
    %17 = arith.mulf %16, %15 : vector<4x128xf32>
    %c0_7 = arith.constant 0 : index
    %c0_8 = arith.constant 0 : index
    %18 = vector.load %arg4[%c0_7, %c0_8] : memref<4x128xf32, #tpu.memory_space<vmem>>, vector<4x128xf32>
    tpu.vector_store %arg4[%c0_7, %c0_8], %17 {strides = array<i32>} : memref<4x128xf32, #tpu.memory_space<vmem>>, vector<4x128xf32>,
    return
  }
  func.func @transform_0(%arg0: i32) -> (i32, i32) {
    %c0_i32 = arith.constant 0 : i32
    %c0_i32_0 = arith.constant 0 : i32
    %c0_i32_1 = arith.constant 0 : i32
    return %c0_i32, %c0_i32_0 : i32, i32
  }
  func.func @transform_1(%arg0: i32) -> (i32, i32) {
    %c0_i32 = arith.constant 0 : i32
    %c0_i32_0 = arith.constant 0 : i32
    return %arg0, %c0_i32 : i32, i32
  }
  func.func @transform_2(%arg0: i32) -> (i32, i32) {
    %c0_i32 = arith.constant 0 : i32
    %c0_i32_0 = arith.constant 0 : i32
    return %arg0, %c0_i32 : i32, i32
  }
  func.func @transform_3(%arg0: i32) -> (i32, i32) {
    %c0_i32 = arith.constant 0 : i32
    %c0_i32_0 = arith.constant 0 : i32
    return %arg0, %c0_i32 : i32, i32
  }
}

</mosaic_0001>

<llo_original>
// kernel: tpu_custom_call.1
$region0: #{tpu_custom_call.1}
  #allocation0 [shape = 'u32[]', space=smem, size = 0x4, offset = 0x4, fixed_abs, tag = 'smem constant byte address 0x4 - core index']
  #allocation1 [shape = 'u32[144,128]{1,0:T(1,128)}', space=vmem, size = 0x12000, scoped, tag = 'internal scratch']
  %s0 = inlined_call_operand.hbm [shape: bf16[384,128], index: 0, kind: input, shape index: {}]
  %s1 = inlined_call_operand.hbm [shape: f32[4,384], index: 1, kind: input, shape index: {}]
  %s2 = inlined_call_operand.hbm [shape: f32[4,384], index: 2, kind: input, shape index: {}]
  %s3 = inlined_call_operand.hbm [shape: f32[4,128], index: 3, kind: output, shape index: {}]
  %s4 = sld [smem:[#allocation0]]
  $region34: #{tpu_custom_call.1} parent=0
    _
  %s6 = ssub.s32 1, %s4
  %s7 = scalar_select 0, %s6, %s4
  $region1: #{tpu_custom_call.1} parent=0
    #allocation2 [shape = 'u8[98304]{0}', space=vmem, size = 0x18000, scoped, tag = 'input window, operand 0, single buffered']
    #allocation3 [shape = 's32[1]{0}', space=sflag, size = 0x4, scoped, tag = 'scoped memory for tpu_custom_call.1']
    #allocation4 [shape = 's32[1]{0}', space=sflag, size = 0x4, scoped, tag = 'scoped memory for tpu_custom_call.1']
    #allocation5 [shape = 'u8[6144]{0}', space=vmem, size = 0x1800, scoped, tag = 'input window, operand 1, single buffered']
    #allocation6 [shape = 's32[1]{0}', space=sflag, size = 0x4, scoped, tag = 'scoped memory for tpu_custom_call.1']
    #allocation7 [shape = 'u8[6144]{0}', space=vmem, size = 0x1800, scoped, tag = 'input window, operand 2, single buffered']
    #allocation8 [shape = 'u8[2048]{0}', space=vmem, size = 0x800, scoped, tag = 'output window, operand 0, single buffered']
    %8 = vsyncpa [#allocation3], 0
    %9 = vsyncpa [#allocation6], 0
    %10 = vsyncpa [#allocation4], 0
    // Predicated region
    $region2: #{tpu_custom_call.1} parent=1 // pred_check
      _
    $region3: #{tpu_custom_call.1} parent=1 // pred_check_branch
      %12 = sbr.rel (0) target = $region5
    $region4: #{tpu_custom_call.1} parent=1 // pred_region
      %s14 = ssub.s32 3072, 3072
      %15 = vsyncadd [#allocation3], %s14
      %s16 = sshll.u32 [#allocation2], 4
      %s17 = int_to_ptr.vmem [resolvable:$true] %s16
      %22 = dma.hbm_to_vmem [thread:$0]  %s0, 3072, %s17, [#allocation3], 64, 64, 4
    $region5: #{tpu_custom_call.1} parent=1 // pred_fallthru
      _
    // Predicated region
    $region6: #{tpu_custom_call.1} parent=1 // pred_check
      _
    $region7: #{tpu_custom_call.1} parent=1 // pred_check_branch
      %24 = sbr.rel (0) target = $region9
    $region8: #{tpu_custom_call.1} parent=1 // pred_region
      %s26 = ssub.s32 192, 192
      %27 = vsyncadd [#allocation6], %s26
      %s29 = sshll.u32 [#allocation5], 4
      %s30 = int_to_ptr.vmem [resolvable:$true] %s29
      %32 = dma.hbm_to_vmem [thread:$0]  %s1, 192, %s30, [#allocation6]
    $region9: #{tpu_custom_call.1} parent=1 // pred_fallthru
      _
    // Predicated region
    $region10: #{tpu_custom_call.1} parent=1 // pred_check
      _
    $region11: #{tpu_custom_call.1} parent=1 // pred_check_branch
      %34 = sbr.rel (0) target = $region13
    $region12: #{tpu_custom_call.1} parent=1 // pred_region
      %s36 = ssub.s32 192, 192
      %37 = vsyncadd [#allocation6], %s36
      %s39 = sshll.u32 [#allocation7], 4
      %s40 = int_to_ptr.vmem [resolvable:$true] %s39
      %42 = dma.hbm_to_vmem [thread:$0]  %s2, 192, %s40, [#allocation6]
    $region13: #{tpu_custom_call.1} parent=1 // pred_fallthru
      _
    // Predicated region
    $region14: #{tpu_custom_call.1} parent=1 // pred_check
      _
    $region15: #{tpu_custom_call.1} parent=1 // pred_check_branch
      %44 = sbr.rel (0) target = $region17
    $region16: #{tpu_custom_call.1} parent=1 // pred_region
      %45 = dma.done [#allocation3], 3072
    $region17: #{tpu_custom_call.1} parent=1 // pred_fallthru
      _
    // Predicated region
    $region18: #{tpu_custom_call.1} parent=1 // pred_check
      _
    $region19: #{tpu_custom_call.1} parent=1 // pred_check_branch
      %47 = sbr.rel (0) target = $region21
    $region20: #{tpu_custom_call.1} parent=1 // pred_region
      %48 = dma.done [#allocation6], 192
    $region21: #{tpu_custom_call.1} parent=1 // pred_fallthru
      _
    // Predicated region
    $region22: #{tpu_custom_call.1} parent=1 // pred_check
      _
    $region23: #{tpu_custom_call.1} parent=1 // pred_check_branch
      %50 = sbr.rel (0) target = $region25
    $region24: #{tpu_custom_call.1} parent=1 // pred_region
      %51 = dma.done [#allocation6], 192
    $region25: #{tpu_custom_call.1} parent=1 // pred_fallthru
      _
    %v53 = vld [vmem:[#allocation5] sm:$0xff]
    %v54 = vld [vmem:[#allocation5 + $0x8] sm:$0xf]
    %v55 = vld [vmem:[#allocation7] sm:$0xff]
    %v56 = vld [vmem:[#allocation7 + $0x8] sm:$0xf]
    %v57 = vmul.f32 %v53, %v55
    %v58 = vmul.f32 %v54, %v56
    %v59 = vld [vmem:[#allocation2] sm:$0xf]
    %v60 = vld [vmem:[#allocation2 + $0x4] sm:$0xf]
    %v61 = vld [vmem:[#allocation2 + $0x8] sm:$0xf]
    %v62 = vld [vmem:[#allocation2 + $0xc] sm:$0xf]
    %v63 = vld [vmem:[#allocation2 + $0x10] sm:$0xf]
    %v64 = vld [vmem:[#allocation2 + $0x14] sm:$0xf]
    %v65 = vld [vmem:[#allocation2 + $0x18] sm:$0xf]
    %v66 = vld [vmem:[#allocation2 + $0x1c] sm:$0xf]
    %v67 = vld [vmem:[#allocation2 + $0x20] sm:$0xf]
    %v68 = vld [vmem:[#allocation2 + $0x24] sm:$0xf]
    %v69 = vld [vmem:[#allocation2 + $0x28] sm:$0xf]
    %v70 = vld [vmem:[#allocation2 + $0x2c] sm:$0xf]
    %v71 = vld [vmem:[#allocation2 + $0x30] sm:$0xf]
    %v72 = vld [vmem:[#allocation2 + $0x34] sm:$0xf]
    %v73 = vld [vmem:[#allocation2 + $0x38] sm:$0xf]
    %v74 = vld [vmem:[#allocation2 + $0x3c] sm:$0xf]
    %v75 = vld [vmem:[#allocation2 + $0x40] sm:$0xf]
    %v76 = vld [vmem:[#allocation2 + $0x44] sm:$0xf]
    %v77 = vld [vmem:[#allocation2 + $0x48] sm:$0xf]
    %v78 = vld [vmem:[#allocation2 + $0x4c] sm:$0xf]
    %v79 = vld [vmem:[#allocation2 + $0x50] sm:$0xf]
    %v80 = vld [vmem:[#allocation2 + $0x54] sm:$0xf]
    %v81 = vld [vmem:[#allocation2 + $0x58] sm:$0xf]
    %v82 = vld [vmem:[#allocation2 + $0x5c] sm:$0xf]
    %v83 = vld [vmem:[#allocation2 + $0x60] sm:$0xf]
    %v84 = vld [vmem:[#allocation2 + $0x64] sm:$0xf]
    %v85 = vld [vmem:[#allocation2 + $0x68] sm:$0xf]
    %v86 = vld [vmem:[#allocation2 + $0x6c] sm:$0xf]
    %v87 = vld [vmem:[#allocation2 + $0x70] sm:$0xf]
    %v88 = vld [vmem:[#allocation2 + $0x74] sm:$0xf]
    %v89 = vld [vmem:[#allocation2 + $0x78] sm:$0xf]
    %v90 = vld [vmem:[#allocation2 + $0x7c] sm:$0xf]
    %v91 = vld [vmem:[#allocation2 + $0x80] sm:$0xf]
    %v92 = vld [vmem:[#allocation2 + $0x84] sm:$0xf]
    %v93 = vld [vmem:[#allocation2 + $0x88] sm:$0xf]
    %v94 = vld [vmem:[#allocation2 + $0x8c] sm:$0xf]
    %v95 = vld [vmem:[#allocation2 + $0x90] sm:$0xf]
    %v96 = vld [vmem:[#allocation2 + $0x94] sm:$0xf]
    %v97 = vld [vmem:[#allocation2 + $0x98] sm:$0xf]
    %v98 = vld [vmem:[#allocation2 + $0x9c] sm:$0xf]
    %v99 = vld [vmem:[#allocation2 + $0xa0] sm:$0xf]
    %v100 = vld [vmem:[#allocation2 + $0xa4] sm:$0xf]
    %v101 = vld [vmem:[#allocation2 + $0xa8] sm:$0xf]
    %v102 = vld [vmem:[#allocation2 + $0xac] sm:$0xf]
    %v103 = vld [vmem:[#allocation2 + $0xb0] sm:$0xf]
    %v104 = vld [vmem:[#allocation2 + $0xb4] sm:$0xf]
    %v105 = vld [vmem:[#allocation2 + $0xb8] sm:$0xf]
    %v106 = vld [vmem:[#allocation2 + $0xbc] sm:$0xf]
    %v108 = vcombine.high %v57, %v57
    %v110 = vpack.c.bf16 %v57, %v57
    %v111 = vpack.c.bf16 %v108, %v108
    %v112 = vpack.c.bf16 %v58, %v58
    %v113 = vunpack.c.l.bf16 %v110
    %v114 = vunpack.c.l.bf16 %v111
    %v115 = vunpack.c.l.bf16 %v112
    %v118 = vcombine.low %v113, %v114
    %v120 = vsub.f32 %v57, %v118
    %v121 = vsub.f32 %v58, %v115
    %v123 = vcombine.high %v120, %v120
    %v125 = vpack.c.bf16 %v120, %v120
    %v126 = vpack.c.bf16 %v123, %v123
    %v127 = vpack.c.bf16 %v121, %v121
    %v128 = vunpack.c.l.bf16 %v125
    %v129 = vunpack.c.l.bf16 %v126
    %v130 = vunpack.c.l.bf16 %v127
    %v133 = vcombine.low %v128, %v129
    %v135 = vsub.f32 %v120, %v133
    %v136 = vsub.f32 %v121, %v130
    %v138 = vcombine.high %v135, %v135
    %v140 = vpack.c.bf16 %v135, %v135
    %v141 = vpack.c.bf16 %v138, %v138
    %v142 = vpack.c.bf16 %v136, %v136
    %v191 = vunpack.c.l.b16 %v59
    %v192 = vunpack.c.l.b16 %v60
    %v193 = vunpack.c.l.b16 %v61
    %v194 = vunpack.c.l.b16 %v62
    %v195 = vunpack.c.l.b16 %v63
    %v196 = vunpack.c.l.b16 %v64
    %v197 = vunpack.c.l.b16 %v65
    %v198 = vunpack.c.l.b16 %v66
    %v199 = vunpack.c.l.b16 %v67
    %v200 = vunpack.c.l.b16 %v68
    %v201 = vunpack.c.l.b16 %v69
    %v202 = vunpack.c.l.b16 %v70
    %v203 = vunpack.c.l.b16 %v71
    %v204 = vunpack.c.l.b16 %v72
    %v205 = vunpack.c.l.b16 %v73
    %v206 = vunpack.c.l.b16 %v74
    %v207 = vunpack.c.l.b16 %v75
    %v208 = vunpack.c.l.b16 %v76
    %v209 = vunpack.c.l.b16 %v77
    %v210 = vunpack.c.l.b16 %v78
    %v211 = vunpack.c.l.b16 %v79
    %v212 = vunpack.c.l.b16 %v80
    %v213 = vunpack.c.l.b16 %v81
    %v214 = vunpack.c.l.b16 %v82
    %v215 = vunpack.c.l.b16 %v83
    %v216 = vunpack.c.l.b16 %v84
    %v217 = vunpack.c.l.b16 %v85
    %v218 = vunpack.c.l.b16 %v86
    %v219 = vunpack.c.l.b16 %v87
    %v220 = vunpack.c.l.b16 %v88
    %v221 = vunpack.c.l.b16 %v89
    %v222 = vunpack.c.l.b16 %v90
    %v223 = vunpack.c.l.b16 %v91
    %v224 = vunpack.c.l.b16 %v92
    %v225 = vunpack.c.l.b16 %v93
    %v226 = vunpack.c.l.b16 %v94
    %v227 = vunpack.c.l.b16 %v95
    %v228 = vunpack.c.l.b16 %v96
    %v229 = vunpack.c.l.b16 %v97
    %v230 = vunpack.c.l.b16 %v98
    %v231 = vunpack.c.l.b16 %v99
    %v232 = vunpack.c.l.b16 %v100
    %v233 = vunpack.c.l.b16 %v101
    %v234 = vunpack.c.l.b16 %v102
    %v235 = vunpack.c.l.b16 %v103
    %v236 = vunpack.c.l.b16 %v104
    %v237 = vunpack.c.l.b16 %v105
    %v238 = vunpack.c.l.b16 %v106
    %v239 = vpack.c.b16 %v192, %v191
    %v240 = vpack.c.b16 %v194, %v193
    %v241 = vpack.c.b16 %v196, %v195
    %v242 = vpack.c.b16 %v198, %v197
    %v243 = vpack.c.b16 %v200, %v199
    %v244 = vpack.c.b16 %v202, %v201
    %v245 = vpack.c.b16 %v204, %v203
    %v246 = vpack.c.b16 %v206, %v205
    %v247 = vpack.c.b16 %v208, %v207
    %v248 = vpack.c.b16 %v210, %v209
    %v249 = vpack.c.b16 %v212, %v211
    %v250 = vpack.c.b16 %v214, %v213
    %v251 = vpack.c.b16 %v216, %v215
    %v252 = vpack.c.b16 %v218, %v217
    %v253 = vpack.c.b16 %v220, %v219
    %v254 = vpack.c.b16 %v222, %v221
    %v255 = vpack.c.b16 %v224, %v223
    %v256 = vpack.c.b16 %v226, %v225
    %v257 = vpack.c.b16 %v228, %v227
    %v258 = vpack.c.b16 %v230, %v229
    %v259 = vpack.c.b16 %v232, %v231
    %v260 = vpack.c.b16 %v234, %v233
    %v261 = vpack.c.b16 %v236, %v235
    %v262 = vpack.c.b16 %v238, %v237
    %287 = vmatprep.subr.bf16.mxu0 0
    %288 = vmatpush1.bf16.msra.mxu0 %v239
    %289 = vmatprep.subr.bf16.mxu0 0
    %290 = vmatpush1.bf16.msra.mxu0 %v240
    %291 = vmatprep.subr.bf16.mxu0 0
    %292 = vmatpush1.bf16.msra.mxu0 %v241
    %293 = vmatprep.subr.bf16.mxu0 0
    %294 = vmatpush1.bf16.msra.mxu0 %v242
    %295 = vmatprep.subr.bf16.mxu0 0
    %296 = vmatpush1.bf16.msra.mxu0 %v243
    %297 = vmatprep.subr.bf16.mxu0 0
    %298 = vmatpush1.bf16.msra.mxu0 %v244
    %299 = vmatprep.subr.bf16.mxu0 0
    %300 = vmatpush1.bf16.msra.mxu0 %v245
    %301 = vmatprep.subr.bf16.mxu0 0
    %302 = vmatpush1.bf16.msra.mxu0 %v246
    %303 = vmatprep.subr.bf16.mxu0 0
    %304 = vmatpush1.bf16.msra.mxu0 %v247
    %305 = vmatprep.subr.bf16.mxu0 0
    %306 = vmatpush1.bf16.msra.mxu0 %v248
    %307 = vmatprep.subr.bf16.mxu0 0
    %308 = vmatpush1.bf16.msra.mxu0 %v249
    %309 = vmatprep.subr.bf16.mxu0 0
    %310 = vmatpush1.bf16.msra.mxu0 %v250
    %311 = vmatprep.subr.bf16.mxu0 0
    %312 = vmatpush1.bf16.msra.mxu0 %v251
    %313 = vmatprep.subr.bf16.mxu0 0
    %314 = vmatpush1.bf16.msra.mxu0 %v252
    %315 = vmatprep.subr.bf16.mxu0 0
    %316 = vmatpush1.bf16.msra.mxu0 %v253
    %317 = vmatprep.subr.bf16.mxu0 0
    %318 = vmatpush1.bf16.msra.mxu0 %v254
    %319 = vmatprep.mubr.bf16.mxu0 %v126
    %320 = vmatmul.mubr.bf16.gmra.mrb[0].mxu0 %v125
    %v321 = vpop.f32.mrb[0].mxu0
    %v322 = vadd.f32 0.0, %v321
    %v323 = vpop.f32.mrb[0].mxu0
    %v324 = vpop.f32.mrb[0].mxu0
    %v325 = vpop.f32.mrb[0].mxu0
    %326 = vdwg.mxu0
    %327 = vmatprep.subr.bf16.mxu0 0
    %328 = vmatpush1.bf16.msra.mxu0 %v255
    %329 = vmatprep.subr.bf16.mxu0 0
    %330 = vmatpush1.bf16.msra.mxu0 %v256
    %331 = vmatprep.subr.bf16.mxu0 0
    %332 = vmatpush1.bf16.msra.mxu0 %v257
    %333 = vmatprep.subr.bf16.mxu0 0
    %334 = vmatpush1.bf16.msra.mxu0 %v258
    %335 = vmatprep.subr.bf16.mxu0 0
    %336 = vmatpush1.bf16.msra.mxu0 %v259
    %337 = vmatprep.subr.bf16.mxu0 0
    %338 = vmatpush1.bf16.msra.mxu0 %v260
    %339 = vmatprep.subr.bf16.mxu0 0
    %340 = vmatpush1.bf16.msra.mxu0 %v261
    %341 = vmatprep.subr.bf16.mxu0 0
    %342 = vmatpush1.bf16.msra.mxu0 %v262
    %343 = vmatprep.subr.bf16.mxu0 0
    %344 = vmatpush1.bf16.msra.mxu0 0
    %345 = vmatprep.subr.bf16.mxu0 0
    %346 = vmatpush1.bf16.msra.mxu0 0
    %347 = vmatprep.subr.bf16.mxu0 0
    %348 = vmatpush1.bf16.msra.mxu0 0
    %349 = vmatprep.subr.bf16.mxu0 0
    %350 = vmatpush1.bf16.msra.mxu0 0
    %351 = vmatprep.subr.bf16.mxu0 0
    %352 = vmatpush1.bf16.msra.mxu0 0
    %353 = vmatprep.subr.bf16.mxu0 0
    %354 = vmatpush1.bf16.msra.mxu0 0
    %355 = vmatprep.subr.bf16.mxu0 0
    %356 = vmatpush1.bf16.msra.mxu0 0
    %357 = vmatprep.subr.bf16.mxu0 0
    %358 = vmatpush1.bf16.msra.mxu0 0
    %359 = vmatprep.mubr.bf16.mxu0 0
    %360 = vmatmul.mubr.bf16.gmra.mrb[0].mxu0 %v127
    %v361 = vpop.f32.mrb[0].mxu0
    %v362 = vadd.f32 %v322, %v361
    %v363 = vpop.f32.mrb[0].mxu0
    %v364 = vpop.f32.mrb[0].mxu0
    %v365 = vpop.f32.mrb[0].mxu0
    %366 = vdwg.mxu0
    %367 = vmatprep.subr.bf16.mxu0 0
    %368 = vmatpush1.bf16.msra.mxu0 %v239
    %369 = vmatprep.subr.bf16.mxu0 0
    %370 = vmatpush1.bf16.msra.mxu0 %v240
    %371 = vmatprep.subr.bf16.mxu0 0
    %372 = vmatpush1.bf16.msra.mxu0 %v241
    %373 = vmatprep.subr.bf16.mxu0 0
    %374 = vmatpush1.bf16.msra.mxu0 %v242
    %375 = vmatprep.subr.bf16.mxu0 0
    %376 = vmatpush1.bf16.msra.mxu0 %v243
    %377 = vmatprep.subr.bf16.mxu0 0
    %378 = vmatpush1.bf16.msra.mxu0 %v244
    %379 = vmatprep.subr.bf16.mxu0 0
    %380 = vmatpush1.bf16.msra.mxu0 %v245
    %381 = vmatprep.subr.bf16.mxu0 0
    %382 = vmatpush1.bf16.msra.mxu0 %v246
    %383 = vmatprep.subr.bf16.mxu0 0
    %384 = vmatpush1.bf16.msra.mxu0 %v247
    %385 = vmatprep.subr.bf16.mxu0 0
    %386 = vmatpush1.bf16.msra.mxu0 %v248
    %387 = vmatprep.subr.bf16.mxu0 0
    %388 = vmatpush1.bf16.msra.mxu0 %v249
    %389 = vmatprep.subr.bf16.mxu0 0
    %390 = vmatpush1.bf16.msra.mxu0 %v250
    %391 = vmatprep.subr.bf16.mxu0 0
    %392 = vmatpush1.bf16.msra.mxu0 %v251
    %393 = vmatprep.subr.bf16.mxu0 0
    %394 = vmatpush1.bf16.msra.mxu0 %v252
    %395 = vmatprep.subr.bf16.mxu0 0
    %396 = vmatpush1.bf16.msra.mxu0 %v253
    %397 = vmatprep.subr.bf16.mxu0 0
    %398 = vmatpush1.bf16.msra.mxu0 %v254
    %399 = vmatprep.mubr.bf16.mxu0 %v111
    %400 = vmatmul.mubr.bf16.gmra.mrb[0].mxu0 %v110
    %v401 = vpop.f32.mrb[0].mxu0
    %v402 = vadd.f32 %v362, %v401
    %v403 = vpop.f32.mrb[0].mxu0
    %v404 = vpop.f32.mrb[0].mxu0
    %v405 = vpop.f32.mrb[0].mxu0
    %406 = vdwg.mxu0
    %407 = vmatprep.subr.bf16.mxu0 0
    %408 = vmatpush1.bf16.msra.mxu0 %v255
    %409 = vmatprep.subr.bf16.mxu0 0
    %410 = vmatpush1.bf16.msra.mxu0 %v256
    %411 = vmatprep.subr.bf16.mxu0 0
    %412 = vmatpush1.bf16.msra.mxu0 %v257
    %413 = vmatprep.subr.bf16.mxu0 0
    %414 = vmatpush1.bf16.msra.mxu0 %v258
    %415 = vmatprep.subr.bf16.mxu0 0
    %416 = vmatpush1.bf16.msra.mxu0 %v259
    %417 = vmatprep.subr.bf16.mxu0 0
    %418 = vmatpush1.bf16.msra.mxu0 %v260
    %419 = vmatprep.subr.bf16.mxu0 0
    %420 = vmatpush1.bf16.msra.mxu0 %v261
    %421 = vmatprep.subr.bf16.mxu0 0
    %422 = vmatpush1.bf16.msra.mxu0 %v262
    %423 = vmatprep.subr.bf16.mxu0 0
    %424 = vmatpush1.bf16.msra.mxu0 0
    %425 = vmatprep.subr.bf16.mxu0 0
    %426 = vmatpush1.bf16.msra.mxu0 0
    %427 = vmatprep.subr.bf16.mxu0 0
    %428 = vmatpush1.bf16.msra.mxu0 0
    %429 = vmatprep.subr.bf16.mxu0 0
    %430 = vmatpush1.bf16.msra.mxu0 0
    %431 = vmatprep.subr.bf16.mxu0 0
    %432 = vmatpush1.bf16.msra.mxu0 0
    %433 = vmatprep.subr.bf16.mxu0 0
    %434 = vmatpush1.bf16.msra.mxu0 0
    %435 = vmatprep.subr.bf16.mxu0 0
    %436 = vmatpush1.bf16.msra.mxu0 0
    %437 = vmatprep.subr.bf16.mxu0 0
    %438 = vmatpush1.bf16.msra.mxu0 0
    %439 = vmatprep.mubr.bf16.mxu0 0
    %440 = vmatmul.mubr.bf16.gmra.mrb[0].mxu0 %v112
    %v441 = vpop.f32.mrb[0].mxu0
    %v442 = vadd.f32 %v402, %v441
    %v443 = vpop.f32.mrb[0].mxu0
    %v444 = vpop.f32.mrb[0].mxu0
    %v445 = vpop.f32.mrb[0].mxu0
    %446 = vdwg.mxu0
    %447 = vmatprep.subr.bf16.mxu0 0
    %448 = vmatpush1.bf16.msra.mxu0 %v239
    %449 = vmatprep.subr.bf16.mxu0 0
    %450 = vmatpush1.bf16.msra.mxu0 %v240
    %451 = vmatprep.subr.bf16.mxu0 0
    %452 = vmatpush1.bf16.msra.mxu0 %v241
    %453 = vmatprep.subr.bf16.mxu0 0
    %454 = vmatpush1.bf16.msra.mxu0 %v242
    %455 = vmatprep.subr.bf16.mxu0 0
    %456 = vmatpush1.bf16.msra.mxu0 %v243
    %457 = vmatprep.subr.bf16.mxu0 0
    %458 = vmatpush1.bf16.msra.mxu0 %v244
    %459 = vmatprep.subr.bf16.mxu0 0
    %460 = vmatpush1.bf16.msra.mxu0 %v245
    %461 = vmatprep.subr.bf16.mxu0 0
    %462 = vmatpush1.bf16.msra.mxu0 %v246
    %463 = vmatprep.subr.bf16.mxu0 0
    %464 = vmatpush1.bf16.msra.mxu0 %v247
    %465 = vmatprep.subr.bf16.mxu0 0
    %466 = vmatpush1.bf16.msra.mxu0 %v248
    %467 = vmatprep.subr.bf16.mxu0 0
    %468 = vmatpush1.bf16.msra.mxu0 %v249
    %469 = vmatprep.subr.bf16.mxu0 0
    %470 = vmatpush1.bf16.msra.mxu0 %v250
    %471 = vmatprep.subr.bf16.mxu0 0
    %472 = vmatpush1.bf16.msra.mxu0 %v251
    %473 = vmatprep.subr.bf16.mxu0 0
    %474 = vmatpush1.bf16.msra.mxu0 %v252
    %475 = vmatprep.subr.bf16.mxu0 0
    %476 = vmatpush1.bf16.msra.mxu0 %v253
    %477 = vmatprep.subr.bf16.mxu0 0
    %478 = vmatpush1.bf16.msra.mxu0 %v254
    %479 = vmatprep.mubr.bf16.mxu0 %v141
    %480 = vmatmul.mubr.bf16.gmra.mrb[0].mxu0 %v140
    %v481 = vpop.f32.mrb[0].mxu0
    %v482 = vadd.f32 0.0, %v481
    %v483 = vpop.f32.mrb[0].mxu0
    %v484 = vpop.f32.mrb[0].mxu0
    %v485 = vpop.f32.mrb[0].mxu0
    %486 = vdwg.mxu0
    %487 = vmatprep.subr.bf16.mxu0 0
    %488 = vmatpush1.bf16.msra.mxu0 %v255
    %489 = vmatprep.subr.bf16.mxu0 0
    %490 = vmatpush1.bf16.msra.mxu0 %v256
    %491 = vmatprep.subr.bf16.mxu0 0
    %492 = vmatpush1.bf16.msra.mxu0 %v257
    %493 = vmatprep.subr.bf16.mxu0 0
    %494 = vmatpush1.bf16.msra.mxu0 %v258
    %495 = vmatprep.subr.bf16.mxu0 0
    %496 = vmatpush1.bf16.msra.mxu0 %v259
    %497 = vmatprep.subr.bf16.mxu0 0
    %498 = vmatpush1.bf16.msra.mxu0 %v260
    %499 = vmatprep.subr.bf16.mxu0 0
    %500 = vmatpush1.bf16.msra.mxu0 %v261
    %501 = vmatprep.subr.bf16.mxu0 0
    %502 = vmatpush1.bf16.msra.mxu0 %v262
    %503 = vmatprep.subr.bf16.mxu0 0
    %504 = vmatpush1.bf16.msra.mxu0 0
    %505 = vmatprep.subr.bf16.mxu0 0
    %506 = vmatpush1.bf16.msra.mxu0 0
    %507 = vmatprep.subr.bf16.mxu0 0
    %508 = vmatpush1.bf16.msra.mxu0 0
    %509 = vmatprep.subr.bf16.mxu0 0
    %510 = vmatpush1.bf16.msra.mxu0 0
    %511 = vmatprep.subr.bf16.mxu0 0
    %512 = vmatpush1.bf16.msra.mxu0 0
    %513 = vmatprep.subr.bf16.mxu0 0
    %514 = vmatpush1.bf16.msra.mxu0 0
    %515 = vmatprep.subr.bf16.mxu0 0
    %516 = vmatpush1.bf16.msra.mxu0 0
    %517 = vmatprep.subr.bf16.mxu0 0
    %518 = vmatpush1.bf16.msra.mxu0 0
    %519 = vmatprep.mubr.bf16.mxu0 0
    %520 = vmatmul.mubr.bf16.gmra.mrb[0].mxu0 %v142
    %v521 = vpop.f32.mrb[0].mxu0
    %v522 = vadd.f32 %v482, %v521
    %v523 = vpop.f32.mrb[0].mxu0
    %v524 = vpop.f32.mrb[0].mxu0
    %v525 = vpop.f32.mrb[0].mxu0
    %526 = vdwg.mxu0
    %v527 = vadd.f32 %v442, %v522
    %v528 = vmul.f32 %v527, %v527
    %v529 = vmul.f32 %v528, %v527
    %530 = vst [vmem:[#allocation8] sm:$0xf] %v529
    // Predicated region
    $region26: #{tpu_custom_call.1} parent=1 // pred_check
      _
    $region27: #{tpu_custom_call.1} parent=1 // pred_check_branch
      %532 = sbr.rel (0) target = $region29
    $region28: #{tpu_custom_call.1} parent=1 // pred_region
      %s534 = ssub.s32 64, 64
      %535 = vsyncadd [#allocation4], %s534
      %s537 = sshll.u32 [#allocation8], 4
      %s538 = int_to_ptr.vmem [resolvable:$true] %s537
      %540 = dma.vmem_to_hbm [thread:$0]  %s538, 64, %s3, [#allocation4]
    $region29: #{tpu_custom_call.1} parent=1 // pred_fallthru
      _
    // Predicated region
    $region30: #{tpu_custom_call.1} parent=1 // pred_check
      _
    $region31: #{tpu_custom_call.1} parent=1 // pred_check_branch
      %542 = sbr.rel (0) target = $region33
    $region32: #{tpu_custom_call.1} parent=1 // pred_region
      %543 = dma.done [#allocation4], 64
    $region33: #{tpu_custom_call.1} parent=1 // pred_fallthru
      _
    %544 = vsyncpa [#allocation3], 1
    %545 = vsyncpa [#allocation6], 1
    %546 = vsyncpa [#allocation4], 1

</llo_original>
